<compile_context>
chip_gen: v7x
topology: tpu7x:2x2x1
jax: 0.10.0
libtpu: 0.0.40
codegen_flags: <defaults>
</compile_context>

<pallas_src>
import functools

import jax
import jax.numpy as jnp
from jax.experimental import pallas as pl
from jax.experimental.pallas import tpu as pltpu


def _round_up(x, m):
    return ((x + m - 1) // m) * m


def _vmem_capacity_bytes():
    """Per-TensorCore VMEM capacity; conservative (v7x-sized) fallback if the query fails."""
    try:
        info = pltpu.get_tpu_info()
        cap = int(getattr(info, "vmem_capacity_bytes", 0))
        if cap > 0:
            return cap
    except Exception:
        pass
    return 64 << 20


def _simple_mlp3_kernel(x_ref, wcat_ref, bcat_ref, wout_t_ref, bout_t_ref, o_ref,
                        *, batch_tile, seq_len, hidden):
    TB, L, H = batch_tile, seq_len, hidden

    # Cast to bf16 inside the kernel (VPU work hidden under the input DMA); no wrapper cast pass.
    xb = x_ref[...].astype(jnp.bfloat16)                                  # (TB*L, Din)

    # One MXU pass per block: columns [0:H] = token projection, column [H] = fused attention
    # score (Wp @ Ws folded into the weight).  Width is lane-padded so the f32 intermediate
    # stays lane-dense and the proj slice below is a cheap leading-lane slice.
    # TODO(synk): if the real Din/H stay tiny (<<128), fold L into the contraction instead
    # (x -> (B, L*Din) with a block-diagonal fused weight) so the MXU K/N dims are lane-dense;
    # skipped here since it complicates the pooling layout and real embedding dims are >=128.
    y = jnp.dot(xb, wcat_ref[...], preferred_element_type=jnp.float32)    # (TB*L, Wpad) f32
    y = y + bcat_ref[...]
    wpad = y.shape[-1]
    y3 = y.reshape(TB, L, wpad)          # layout-preserving when L == 8 (one sublane group/seq)

    proj = y3[:, :, :H]                                                   # (TB, L, H)
    s = y3[:, :, H:H + 1]                                                 # (TB, L, 1)

    # Softmax over the sequence axis (f32); normalization folded in after pooling (EUP recip).
    m = jnp.max(s, axis=1, keepdims=True)                                 # (TB, 1, 1)
    e = jnp.exp(s - m)                                                    # (TB, L, 1)
    num = jnp.sum(e * proj, axis=1)                                       # (TB, H) VPU mul + sublane reduce
    den = jnp.sum(e, axis=1)                                              # (TB, 1)
    pooled = num * pl.reciprocal(den, approx=True)                        # (TB, H)

    # Head: ReLU -> Dropout(identity at eval) -> Linear(H -> O), computed transposed so the
    # store is a small (O_pad, TB) f32 lane-dense slab (batch on lanes, O on sublanes).
    h = jnp.maximum(pooled, 0.0).astype(jnp.bfloat16)                     # (TB, H)
    out_t = jax.lax.dot_general(wout_t_ref[...], h,
                                (((1,), (1,)), ((), ())),
                                preferred_element_type=jnp.float32)       # (O_pad, TB)
    o_ref[...] = (out_t + bout_t_ref[...]).astype(o_ref.dtype)


def simple_mlp3(x, seq_lengths, params, *, batch_tile=None):
    """x: (B, L, Din). seq_lengths: unused (matches the PyTorch forward). Returns (B, O) f32."""
    del seq_lengths
    # TODO(synk): if inputs are length-padded, prefetch seq_lengths (SMEM scalars) and mask the
    # scores with -inf before the softmax; the PyTorch reference does not do this either.
    B, L, Din = x.shape
    H = params["w_proj"].shape[1]
    O = params["w_out"].shape[1]

    # ---- host-side weight fusion (tiny, one-off) --------------------------------------------
    w_proj = params["w_proj"].astype(jnp.float32)                          # (Din, H)
    b_proj = params["b_proj"].reshape(1, H).astype(jnp.float32)
    w_score = params["w_score"].reshape(H, 1).astype(jnp.float32)
    b_score = params["b_score"].reshape(1, 1).astype(jnp.float32)

    # scores = (x @ Wp + bp) @ Ws + bs == x @ (Wp @ Ws) + (bp @ Ws + bs)
    Wpad = _round_up(H + 1, 128)
    w_cat = jnp.zeros((Din, Wpad), jnp.float32)
    w_cat = w_cat.at[:, :H].set(w_proj).at[:, H].set((w_proj @ w_score)[:, 0])
    b_cat = jnp.zeros((1, Wpad), jnp.float32)
    b_cat = b_cat.at[:, :H].set(b_proj).at[0, H].set((b_proj @ w_score + b_score)[0, 0])

    # Transposed, sublane-padded head so the kernel stores an (O_pad, TB) slab.
    O_pad = _round_up(O, 8)
    w_out_t = jnp.zeros((O_pad, H), jnp.float32).at[:O].set(params["w_out"].astype(jnp.float32).T)
    b_out_t = jnp.zeros((O_pad, 1), jnp.float32).at[:O, 0].set(
        params["b_out"].reshape(O).astype(jnp.float32))

    # ---- batch-tile selection against per-generation VMEM -----------------------------------
    x_itemsize = jnp.dtype(x.dtype).itemsize
    cap = _vmem_capacity_bytes()                        # 128 MiB (v5e/v6e) or 64 MiB (v7x)
    budget = min(cap // 3, 48 << 20)                    # ~43 MiB v5e/v6e, ~21 MiB v7x
    per_seq = (2 * L * Din * x_itemsize                 # double-buffered input block
               + L * Din * 2                            # in-kernel bf16 copy of the block
               + 4 * L * Wpad * 4                       # y + live f32 intermediates (proj, e*proj, ...)
               + 2 * O_pad * 4)                         # double-buffered transposed output
    auto_tb = max(128, (budget // per_seq) // 128 * 128)
    tb_cap = auto_tb if batch_tile is None else max(128, (batch_tile // 128) * 128)

    if B <= tb_cap:
        if B >= 512:
            # Split into >=2 blocks so dimension_semantics=("parallel",) can use both
            # TensorCores (v7x megacore); blocks stay multiples of 128 for lane-dense stores.
            TB = _round_up(pl.cdiv(B, 2), 128)
        else:
            TB = B                                      # single full-dim block
    else:
        TB = tb_cap                                     # multiple of 128 -> tiled, ragged tail masked
    grid = pl.cdiv(B, TB)

    # No wrapper-side pad or dtype cast: the (B,L,Din)->(B*L,Din) reshape is a free bitcast,
    # and the ragged last block's out-of-range rows are computed on garbage and masked on store.
    x2 = x.reshape(B * L, Din)
    w_cat_c = w_cat.astype(jnp.bfloat16)
    w_out_t_c = w_out_t.astype(jnp.bfloat16)

    kernel = functools.partial(_simple_mlp3_kernel, batch_tile=TB, seq_len=L, hidden=H)

    cost = pl.CostEstimate(
        flops=2 * B * L * Din * Wpad + 4 * B * L * H + 2 * B * H * O_pad,
        transcendentals=B * L + B,
        bytes_accessed=B * L * Din * x_itemsize + O_pad * B * 4
        + (Din * Wpad + O_pad * H) * 2 + (Wpad + O_pad) * 4,
    )

    out_t = pl.pallas_call(
        kernel,
        out_shape=jax.ShapeDtypeStruct((O_pad, B), jnp.float32),
        grid_spec=pltpu.PrefetchScalarGridSpec(
            num_scalar_prefetch=0,
            grid=(grid,),
            in_specs=[
                pl.BlockSpec((TB * L, Din), lambda b: (b, 0)),   # streamed input rows (stored dtype)
                pl.BlockSpec((Din, Wpad), lambda b: (0, 0)),     # fused proj+score weight (resident)
                pl.BlockSpec((1, Wpad), lambda b: (0, 0)),       # fused bias (f32)
                pl.BlockSpec((O_pad, H), lambda b: (0, 0)),      # transposed head weight (bf16)
                pl.BlockSpec((O_pad, 1), lambda b: (0, 0)),      # transposed head bias (f32)
            ],
            out_specs=pl.BlockSpec((O_pad, TB), lambda b: (0, b)),
        ),
        compiler_params=pltpu.CompilerParams(
            dimension_semantics=("parallel",),
            vmem_limit_bytes=int(min(cap * 3 // 4, budget + (32 << 20))),
        ),
        cost_estimate=cost,
    )(x2, w_cat_c, b_cat, w_out_t_c, b_out_t)

    return out_t[:O, :].T                               # (B, O); tiny transpose outside the kernel


def simple_mlp3_reference(x, params):
    """Pure-JAX f32 reference mirroring the PyTorch forward (eval mode)."""
    proj = x @ params["w_proj"] + params["b_proj"]                        # (B, L, H)
    scores = proj @ params["w_score"] + params["b_score"]                 # (B, L, 1)
    weights = jax.nn.softmax(scores, axis=1)
    pooled = jnp.sum(proj * weights, axis=1)                              # (B, H)
    h = jnp.maximum(pooled, 0.0)                                          # dropout = identity
    return h @ params["w_out"] + params["b_out"]                          # (B, O)


if __name__ == "__main__":
    L, Din, H, O = 8, 16, 32, 4

    key = jax.random.PRNGKey(0)
    ks = jax.random.split(key, 10)
    params = {
        "w_proj":  jax.random.normal(ks[1], (Din, H), jnp.float32) * 0.1,
        "b_proj":  jax.random.normal(ks[2], (1, H), jnp.float32) * 0.1,
        "w_score": jax.random.normal(ks[3], (H, 1), jnp.float32) * 0.1,
        "b_score": jax.random.normal(ks[4], (1, 1), jnp.float32) * 0.1,
        "w_out":   jax.random.normal(ks[5], (H, O), jnp.float32) * 0.1,
        "b_out":   jax.random.normal(ks[6], (1, O), jnp.float32) * 0.1,
    }

    # Case 1: tiny batch -> single full-dim block (grid = 1).
    B1 = 2
    x1 = jax.random.normal(ks[0], (B1, L, Din), jnp.float32)
    sl1 = jnp.full((B1,), L, jnp.int32)       # API parity, unused
    out1 = simple_mlp3(x1, sl1, params)
    jax.block_until_ready(out1)
    ref1 = simple_mlp3_reference(x1, params)
    assert out1.shape == (B1, O)
    assert jnp.allclose(out1, ref1, atol=2e-2, rtol=2e-2), "case 1 mismatch vs reference"

    # Case 2: non-multiple-of-8 batch, still a single block under the auto VMEM-derived tile.
    B2 = 33
    x2 = jax.random.normal(ks[7], (B2, L, Din), jnp.float32)
    sl2 = jnp.full((B2,), L, jnp.int32)
    out2 = simple_mlp3(x2, sl2, params)
    jax.block_until_ready(out2)
    ref2 = simple_mlp3_reference(x2, params)
    assert out2.shape == (B2, O)
    assert jnp.allclose(out2, ref2, atol=2e-2, rtol=2e-2), "case 2 mismatch vs reference"

    # Case 3: forced batch tiling with a ragged tail (grid = 3; last block writes are masked).
    B3 = 300
    x3 = jax.random.normal(ks[8], (B3, L, Din), jnp.float32)
    sl3 = jnp.full((B3,), L, jnp.int32)
    out3 = simple_mlp3(x3, sl3, params, batch_tile=128)
    jax.block_until_ready(out3)
    ref3 = simple_mlp3_reference(x3, params)
    assert out3.shape == (B3, O)
    assert jnp.allclose(out3, ref3, atol=2e-2, rtol=2e-2), "case 3 mismatch vs reference"

    print("KERNEL_OK")
</pallas_src>

<mosaic_0001>
module attributes {stable_mosaic.version = 11 : i64} {
  func.func @_simple_mlp3_kernel(%arg0: i32, %arg1: memref<16x16xf32, #tpu.memory_space<vmem>>, %arg2: memref<16x128xbf16, #tpu.memory_space<vmem>>, %arg3: memref<1x128xf32, #tpu.memory_space<vmem>>, %arg4: memref<8x32xbf16, #tpu.memory_space<vmem>>, %arg5: memref<8x1xf32, #tpu.memory_space<vmem>>, %arg6: memref<8x2xf32, #tpu.memory_space<vmem>>) attributes {dimension_semantics = [#tpu.dimension_semantics<parallel>], iteration_bounds = array<i64: 1>, scalar_prefetch = 0 : i64, scratch_operands = 0 : i64, tpu.core_type = #tpu.core_type<tc>, window_params = [{transform_indices = @transform_0, window_bounds = array<i64: 16, 16>}, {pipeline_mode = #tpu.pipeline_mode<synchronous>, transform_indices = @transform_1, window_bounds = array<i64: 16, 128>}, {pipeline_mode = #tpu.pipeline_mode<synchronous>, transform_indices = @transform_2, window_bounds = array<i64: 1, 128>}, {pipeline_mode = #tpu.pipeline_mode<synchronous>, transform_indices = @transform_3, window_bounds = array<i64: 8, 32>}, {pipeline_mode = #tpu.pipeline_mode<synchronous>, transform_indices = @transform_4, window_bounds = array<i64: 8, 1>}, {transform_indices = @transform_5, window_bounds = array<i64: 8, 2>}]} {
    %c0 = arith.constant 0 : index
    %c0_0 = arith.constant 0 : index
    %0 = vector.load %arg1[%c0, %c0_0] : memref<16x16xf32, #tpu.memory_space<vmem>>, vector<16x16xf32>
    %1 = arith.truncf %0 : vector<16x16xf32> to vector<16x16xbf16>
    %c0_1 = arith.constant 0 : index
    %c0_2 = arith.constant 0 : index
    %2 = vector.load %arg2[%c0_1, %c0_2] : memref<16x128xbf16, #tpu.memory_space<vmem>>, vector<16x128xbf16>
    %cst = arith.constant dense<0.000000e+00> : vector<16x128xf32>
    %3 = tpu.matmul %1, %2, %cst {dimension_numbers = #tpu.dot_dimension_numbers<[1], [0], [0], [1], [0, 0, 1, 1], [], []>} : vector<16x16xbf16>, vector<16x128xbf16>, vector<16x128xf32> -> vector<16x128xf32>
    %c0_3 = arith.constant 0 : index
    %c0_4 = arith.constant 0 : index
    %4 = vector.load %arg3[%c0_3, %c0_4] : memref<1x128xf32, #tpu.memory_space<vmem>>, vector<1x128xf32>
    %5 = vector.broadcast %4 : vector<1x128xf32> to vector<16x128xf32>
    %6 = arith.addf %3, %5 : vector<16x128xf32>
    %7 = vector.shape_cast %6 : vector<16x128xf32> to vector<2x8x128xf32>
    %8 = vector.extract_strided_slice %7 {offsets = [0, 0, 0], sizes = [2, 8, 32], strides = [1, 1, 1]} : vector<2x8x128xf32> to vector<2x8x32xf32>
    %9 = vector.extract_strided_slice %7 {offsets = [0, 0, 32], sizes = [2, 8, 1], strides = [1, 1, 1]} : vector<2x8x128xf32> to vector<2x8x1xf32>
    %cst_5 = arith.constant dense<0xFF800000> : vector<2x1xf32>
    %10 = vector.multi_reduction <maximumf>, %9, %cst_5 [1] : vector<2x8x1xf32> to vector<2x1xf32>
    %11 = vector.shape_cast %10 : vector<2x1xf32> to vector<2x1x1xf32>
    %12 = vector.broadcast %11 : vector<2x1x1xf32> to vector<2x8x1xf32>
    %13 = arith.subf %9, %12 : vector<2x8x1xf32>
    %14 = math.exp %13 : vector<2x8x1xf32>
    %15 = vector.broadcast %14 : vector<2x8x1xf32> to vector<2x8x32xf32>
    %16 = arith.mulf %15, %8 : vector<2x8x32xf32>
    %cst_6 = arith.constant dense<0.000000e+00> : vector<2x32xf32>
    %17 = vector.multi_reduction <add>, %16, %cst_6 [1] : vector<2x8x32xf32> to vector<2x32xf32>
    %cst_7 = arith.constant dense<0.000000e+00> : vector<2x1xf32>
    %18 = vector.multi_reduction <add>, %14, %cst_7 [1] : vector<2x8x1xf32> to vector<2x1xf32>
    %19 = tpu.reciprocal %18 {approx = true} : vector<2x1xf32> -> vector<2x1xf32>
    %20 = vector.broadcast %19 : vector<2x1xf32> to vector<2x32xf32>
    %21 = arith.mulf %17, %20 : vector<2x32xf32>
    %cst_8 = arith.constant 0.000000e+00 : f32
    %22 = vector.broadcast %cst_8 : f32 to vector<2x32xf32>
    %23 = arith.maximumf %21, %22 : vector<2x32xf32>
    %24 = arith.truncf %23 : vector<2x32xf32> to vector<2x32xbf16>
    %c0_9 = arith.constant 0 : index
    %c0_10 = arith.constant 0 : index
    %25 = vector.load %arg4[%c0_9, %c0_10] : memref<8x32xbf16, #tpu.memory_space<vmem>>, vector<8x32xbf16>
    %cst_11 = arith.constant dense<0.000000e+00> : vector<8x2xf32>
    %26 = tpu.matmul %25, %24, %cst_11 {dimension_numbers = #tpu.dot_dimension_numbers<[1], [1], [0], [0], [0, 0, 1, 0], [], []>} : vector<8x32xbf16>, vector<2x32xbf16>, vector<8x2xf32> -> vector<8x2xf32>
    %c0_12 = arith.constant 0 : index
    %c0_13 = arith.constant 0 : index
    %27 = vector.load %arg5[%c0_12, %c0_13] : memref<8x1xf32, #tpu.memory_space<vmem>>, vector<8x1xf32>
    %28 = vector.broadcast %27 : vector<8x1xf32> to vector<8x2xf32>
    %29 = arith.addf %26, %28 : vector<8x2xf32>
    %c0_14 = arith.constant 0 : index
    %c0_15 = arith.constant 0 : index
    %30 = vector.load %arg6[%c0_14, %c0_15] : memref<8x2xf32, #tpu.memory_space<vmem>>, vector<8x2xf32>
    tpu.vector_store %arg6[%c0_14, %c0_15], %29 {strides = array<i32>} : memref<8x2xf32, #tpu.memory_space<vmem>>, vector<8x2xf32>,
    return
  }
  func.func @transform_0(%arg0: i32) -> (i32, i32) {
    %c0_i32 = arith.constant 0 : i32
    %c0_i32_0 = arith.constant 0 : i32
    return %arg0, %c0_i32 : i32, i32
  }
  func.func @transform_1(%arg0: i32) -> (i32, i32) {
    %c0_i32 = arith.constant 0 : i32
    %c0_i32_0 = arith.constant 0 : i32
    %c0_i32_1 = arith.constant 0 : i32
    return %c0_i32, %c0_i32_0 : i32, i32
  }
  func.func @transform_2(%arg0: i32) -> (i32, i32) {
    %c0_i32 = arith.constant 0 : i32
    %c0_i32_0 = arith.constant 0 : i32
    %c0_i32_1 = arith.constant 0 : i32
    return %c0_i32, %c0_i32_0 : i32, i32
  }
  func.func @transform_3(%arg0: i32) -> (i32, i32) {
    %c0_i32 = arith.constant 0 : i32
    %c0_i32_0 = arith.constant 0 : i32
    %c0_i32_1 = arith.constant 0 : i32
    return %c0_i32, %c0_i32_0 : i32, i32
  }
  func.func @transform_4(%arg0: i32) -> (i32, i32) {
    %c0_i32 = arith.constant 0 : i32
    %c0_i32_0 = arith.constant 0 : i32
    %c0_i32_1 = arith.constant 0 : i32
    return %c0_i32, %c0_i32_0 : i32, i32
  }
  func.func @transform_5(%arg0: i32) -> (i32, i32) {
    %c0_i32 = arith.constant 0 : i32
    %c0_i32_0 = arith.constant 0 : i32
    return %c0_i32, %arg0 : i32, i32
  }
}

</mosaic_0001>

<llo_original>
// kernel: tpu_custom_call.1
$region0: #{tpu_custom_call.1}
  #allocation0 [shape = 'u32[]', space=smem, size = 0x4, offset = 0x4, fixed_abs, tag = 'smem constant byte address 0x4 - core index']
  #allocation1 [shape = 'u32[144,128]{1,0:T(1,128)}', space=vmem, size = 0x12000, scoped, tag = 'internal scratch']
  %s0 = inlined_call_operand.hbm [shape: f32[16,16], index: 0, kind: input, shape index: {}]
  %s1 = inlined_call_operand.vmem [shape: bf16[16,128], index: 1, kind: input, shape index: {}]
  %s2 = inlined_call_operand.vmem [shape: f32[1,128], index: 2, kind: input, shape index: {}]
  %s3 = inlined_call_operand.vmem [shape: bf16[8,32], index: 3, kind: input, shape index: {}]
  %s4 = inlined_call_operand.vmem [shape: f32[8,1], index: 4, kind: input, shape index: {}]
  %s5 = inlined_call_operand.vmem [shape: f32[8,2], index: 5, kind: output, shape index: {}]
  %s6 = sld [smem:[#allocation0]]
  $region34: #{tpu_custom_call.1} parent=0
    _
  %s8 = ssub.s32 1, %s6
  %s9 = scalar_select 0, %s8, %s6
  $region1: #{tpu_custom_call.1} parent=0
    #allocation2 [shape = 'u8[8192]{0}', space=vmem, size = 0x2000, scoped, tag = 'input window, operand 0, single buffered']
    #allocation3 [shape = 's32[1]{0}', space=sflag, size = 0x4, scoped, tag = 'scoped memory for tpu_custom_call.1']
    %10 = vsyncpa [#allocation3], 0
    // Predicated region
    $region2: #{tpu_custom_call.1} parent=1 // pred_check
      _
    $region3: #{tpu_custom_call.1} parent=1 // pred_check_branch
      %12 = sbr.rel (0) target = $region5
    $region4: #{tpu_custom_call.1} parent=1 // pred_region
      %s14 = ssub.s32 256, 256
      %15 = vsyncadd [#allocation3], %s14
      %s16 = sshll.u32 [#allocation2], 4
      %s17 = int_to_ptr.vmem [resolvable:$true] %s16
      %22 = dma.hbm_to_vmem [thread:$0]  %s0, 256, %s17, [#allocation3], 128, 128, 8
    $region5: #{tpu_custom_call.1} parent=1 // pred_fallthru
      _
    // Predicated region
    $region6: #{tpu_custom_call.1} parent=1 // pred_check
      _
    $region7: #{tpu_custom_call.1} parent=1 // pred_check_branch
      %24 = sbr.rel (0) target = $region9
    $region8: #{tpu_custom_call.1} parent=1 // pred_region
      _
    $region9: #{tpu_custom_call.1} parent=1 // pred_fallthru
      _
    // Predicated region
    $region10: #{tpu_custom_call.1} parent=1 // pred_check
      _
    $region11: #{tpu_custom_call.1} parent=1 // pred_check_branch
      %26 = sbr.rel (0) target = $region13
    $region12: #{tpu_custom_call.1} parent=1 // pred_region
      _
    $region13: #{tpu_custom_call.1} parent=1 // pred_fallthru
      _
    // Predicated region
    $region14: #{tpu_custom_call.1} parent=1 // pred_check
      _
    $region15: #{tpu_custom_call.1} parent=1 // pred_check_branch
      %28 = sbr.rel (0) target = $region17
    $region16: #{tpu_custom_call.1} parent=1 // pred_region
      _
    $region17: #{tpu_custom_call.1} parent=1 // pred_fallthru
      _
    // Predicated region
    $region18: #{tpu_custom_call.1} parent=1 // pred_check
      _
    $region19: #{tpu_custom_call.1} parent=1 // pred_check_branch
      %30 = sbr.rel (0) target = $region21
    $region20: #{tpu_custom_call.1} parent=1 // pred_region
      _
    $region21: #{tpu_custom_call.1} parent=1 // pred_fallthru
      _
    // Predicated region
    $region22: #{tpu_custom_call.1} parent=1 // pred_check
      _
    $region23: #{tpu_custom_call.1} parent=1 // pred_check_branch
      %32 = sbr.rel (0) target = $region25
    $region24: #{tpu_custom_call.1} parent=1 // pred_region
      %33 = dma.done [#allocation3], 256
    $region25: #{tpu_custom_call.1} parent=1 // pred_fallthru
      _
    %v35 = vld [vmem:[#allocation2] sm:$0xff]
    %v36 = vld [vmem:[#allocation2 + $0x8] sm:$0xff]
    %v37 = vpack.c.bf16 %v36, %v35
    %v38 = vld [vmem:[%s1] sm:$0xf]
    %v39 = vld [vmem:[%s1 + $0x4] sm:$0xf]
    %v40 = vld [vmem:[%s2] sm:$0x1]
    %v42 = vlaneseq
    %v43 = vshrl.u32 %v42, 7
    %v44 = vsub.s32 0, %v43
    %v45 = vrot.slane %v40, %v44
    %v49 = vunpack.c.l.b16 %v38
    %v50 = vunpack.c.l.b16 %v39
    %v51 = vpack.c.b16 %v50, %v49
    %vm53 = vcmask 130048
    %v55 = vsel %vm53, %v37, 0
    %57 = vmatprep.subr.bf16.mxu0 0
    %58 = vmatpush1.bf16.msra.mxu0 %v51
    %59 = vmatprep.subr.bf16.mxu0 0
    %60 = vmatpush1.bf16.msra.mxu0 0
    %61 = vmatprep.subr.bf16.mxu0 0
    %62 = vmatpush1.bf16.msra.mxu0 0
    %63 = vmatprep.subr.bf16.mxu0 0
    %64 = vmatpush1.bf16.msra.mxu0 0
    %65 = vmatprep.subr.bf16.mxu0 0
    %66 = vmatpush1.bf16.msra.mxu0 0
    %67 = vmatprep.subr.bf16.mxu0 0
    %68 = vmatpush1.bf16.msra.mxu0 0
    %69 = vmatprep.subr.bf16.mxu0 0
    %70 = vmatpush1.bf16.msra.mxu0 0
    %71 = vmatprep.subr.bf16.mxu0 0
    %72 = vmatpush1.bf16.msra.mxu0 0
    %73 = vmatprep.subr.bf16.mxu0 0
    %74 = vmatpush1.bf16.msra.mxu0 0
    %75 = vmatprep.subr.bf16.mxu0 0
    %76 = vmatpush1.bf16.msra.mxu0 0
    %77 = vmatprep.subr.bf16.mxu0 0
    %78 = vmatpush1.bf16.msra.mxu0 0
    %79 = vmatprep.subr.bf16.mxu0 0
    %80 = vmatpush1.bf16.msra.mxu0 0
    %81 = vmatprep.subr.bf16.mxu0 0
    %82 = vmatpush1.bf16.msra.mxu0 0
    %83 = vmatprep.subr.bf16.mxu0 0
    %84 = vmatpush1.bf16.msra.mxu0 0
    %85 = vmatprep.subr.bf16.mxu0 0
    %86 = vmatpush1.bf16.msra.mxu0 0
    %87 = vmatprep.subr.bf16.mxu0 0
    %88 = vmatpush1.bf16.msra.mxu0 0
    %89 = vmatprep.mubr.bf16.mxu0 0
    %90 = vmatmul.mubr.bf16.gmra.mrb[0].mxu0 %v55
    %v91 = vpop.f32.mrb[0].mxu0
    %v92 = vadd.f32 %v45, %v91
    %v93 = vpop.f32.mrb[0].mxu0
    %v94 = vpop.f32.mrb[0].mxu0
    %v95 = vadd.f32 %v45, %v94
    %v96 = vpop.f32.mrb[0].mxu0
    %97 = vdwg.mxu0
    %vm98 = vcmask 269568
    %v99 = vsel %vm98, %v92, -inf
    %v100 = vrot.slane %v99, 4
    %v101 = vmax.f32 %v99, %v100
    %v102 = vrot.slane %v101, 2
    %v103 = vmax.f32 %v101, %v102
    %v104 = vrot.slane %v103, 1
    %v105 = vmax.f32 %v103, %v104
    %v106 = vsel %vm98, %v95, -inf
    %v107 = vrot.slane %v106, 4
    %v108 = vmax.f32 %v106, %v107
    %v109 = vrot.slane %v108, 2
    %v110 = vmax.f32 %v108, %v109
    %v111 = vrot.slane %v110, 1
    %v112 = vmax.f32 %v110, %v111
    %v113 = vsub.f32 %v92, %v105
    %v114 = vsub.f32 %v95, %v112
    %v115 = vmul.f32 %v113, 1.442695
    %v116 = vpow.pop %v115
    %v117 = vmul.f32 %v114, 1.442695
    %v118 = vpow.pop %v117
    %120 = vset.pattern.permute.xlu0 32
    %121 = vperm.xlu0 %120, %v116
    %v122 = vpop.permute.xlu0 %121
    %125 = vset.pattern.permute.xlu0 32
    %126 = vperm.xlu0 %125, %v118
    %v127 = vpop.permute.xlu0 %126
    %v129 = vmul.f32 %v122, %v92
    %v130 = vmul.f32 %v127, %v95
    %vm131 = vcmask 261120
    %v132 = vsel %vm131, %v129, 0.0
    %v133 = vrot.slane %v132, 4
    %v134 = vadd.f32 %v132, %v133
    %v135 = vrot.slane %v134, 2
    %v136 = vadd.f32 %v134, %v135
    %v137 = vrot.slane %v136, 1
    %v138 = vadd.f32 %v136, %v137
    %v139 = vsel %vm131, %v130, 0.0
    %v140 = vrot.slane %v139, 4
    %v141 = vadd.f32 %v139, %v140
    %v142 = vrot.slane %v141, 2
    %v143 = vadd.f32 %v141, %v142
    %v144 = vrot.slane %v143, 1
    %v145 = vadd.f32 %v143, %v144
    %v146 = vsel %vm98, %v116, 0.0
    %v147 = vrot.slane %v146, 4
    %v148 = vadd.f32 %v146, %v147
    %v149 = vrot.slane %v148, 2
    %v150 = vadd.f32 %v148, %v149
    %v151 = vrot.slane %v150, 1
    %v152 = vadd.f32 %v150, %v151
    %v153 = vsel %vm98, %v118, 0.0
    %v154 = vrot.slane %v153, 4
    %v155 = vadd.f32 %v153, %v154
    %v156 = vrot.slane %v155, 2
    %v157 = vadd.f32 %v155, %v156
    %v158 = vrot.slane %v157, 1
    %v159 = vadd.f32 %v157, %v158
    %v160 = vrcp.pop %v152
    %v161 = vrcp.pop %v159
    %163 = vset.pattern.permute.xlu0 32
    %164 = vperm.xlu0 %163, %v160
    %v165 = vpop.permute.xlu0 %164
    %168 = vset.pattern.permute.xlu0 32
    %169 = vperm.xlu0 %168, %v161
    %v170 = vpop.permute.xlu0 %169
    %v172 = vmul.f32 %v138, %v165
    %v173 = vmul.f32 %v145, %v170
    %v174 = vmax.f32 %v172, 0.0
    %v175 = vmax.f32 %v173, 0.0
    %v176 = vpack.c.bf16 %v174, %v174
    %v177 = vpack.c.bf16 %v175, %v175
    %v178 = vld [vmem:[%s3] sm:$0xf]
    %v179 = vld [vmem:[%s4] sm:$0xff]
    %181 = vset.pattern.permute.xlu0 0
    %182 = vperm.xlu0 %181, %v179
    %v183 = vpop.permute.xlu0 %182
    %v187 = vunpack.c.l.b16 %v176
    %v188 = vunpack.c.l.b16 %v177
    %vm189 = vcmask 1041409
    %v190 = vsel %vm189, %v188, %v187
    %v191 = vpack.c.b16 %v190, %v190
    %v193 = vsel %vm131, %v178, 0
    %v196 = vsel %vm131, %v191, 0
    %198 = vmatprep.subr.bf16.mxu0 0
    %199 = vmatpush1.bf16.xpose.msra.mxu0 %v196
    %200 = vmatprep.subr.bf16.mxu0 0
    %201 = vmatpush1.bf16.xpose.msra.mxu0 0
    %202 = vmatprep.subr.bf16.mxu0 0
    %203 = vmatpush1.bf16.xpose.msra.mxu0 0
    %204 = vmatprep.subr.bf16.mxu0 0
    %205 = vmatpush1.bf16.xpose.msra.mxu0 0
    %206 = vmatprep.subr.bf16.mxu0 0
    %207 = vmatpush1.bf16.xpose.msra.mxu0 0
    %208 = vmatprep.subr.bf16.mxu0 0
    %209 = vmatpush1.bf16.xpose.msra.mxu0 0
    %210 = vmatprep.subr.bf16.mxu0 0
    %211 = vmatpush1.bf16.xpose.msra.mxu0 0
    %212 = vmatprep.subr.bf16.mxu0 0
    %213 = vmatpush1.bf16.xpose.msra.mxu0 0
    %214 = vmatprep.subr.bf16.mxu0 0
    %215 = vmatpush1.bf16.xpose.msra.mxu0 0
    %216 = vmatprep.subr.bf16.mxu0 0
    %217 = vmatpush1.bf16.xpose.msra.mxu0 0
    %218 = vmatprep.subr.bf16.mxu0 0
    %219 = vmatpush1.bf16.xpose.msra.mxu0 0
    %220 = vmatprep.subr.bf16.mxu0 0
    %221 = vmatpush1.bf16.xpose.msra.mxu0 0
    %222 = vmatprep.subr.bf16.mxu0 0
    %223 = vmatpush1.bf16.xpose.msra.mxu0 0
    %224 = vmatprep.subr.bf16.mxu0 0
    %225 = vmatpush1.bf16.xpose.msra.mxu0 0
    %226 = vmatprep.subr.bf16.mxu0 0
    %227 = vmatpush1.bf16.xpose.msra.mxu0 0
    %228 = vmatprep.subr.bf16.mxu0 0
    %229 = vmatpush1.bf16.xpose.msra.mxu0 0
    %230 = vmatprep.mubr.bf16.mxu0 0
    %231 = vmatmul.mubr.bf16.gmra.mrb[0].mxu0 %v193
    %v232 = vpop.f32.mrb[0].mxu0
    %v233 = vadd.f32 %v183, %v232
    %v234 = vpop.f32.mrb[0].mxu0
    %v235 = vpop.f32.mrb[0].mxu0
    %v236 = vpop.f32.mrb[0].mxu0
    %237 = vdwg.mxu0
    %vm238 = vcmask 15360
    %239 = vst.msk [vmem:[%s5] sm:$0xff] %vm238, %v233
    // Predicated region
    $region26: #{tpu_custom_call.1} parent=1 // pred_check
      _
    $region27: #{tpu_custom_call.1} parent=1 // pred_check_branch
      %241 = sbr.rel (0) target = $region29
    $region28: #{tpu_custom_call.1} parent=1 // pred_region
      _
    $region29: #{tpu_custom_call.1} parent=1 // pred_fallthru
      _
    // Predicated region
    $region30: #{tpu_custom_call.1} parent=1 // pred_check
      _
    $region31: #{tpu_custom_call.1} parent=1 // pred_check_branch
      %243 = sbr.rel (0) target = $region33
    $region32: #{tpu_custom_call.1} parent=1 // pred_region
      _
    $region33: #{tpu_custom_call.1} parent=1 // pred_fallthru
      _
    %244 = vsyncpa [#allocation3], 1

</llo_original>
